<compile_context>
chip_gen: v7x
topology: tpu7x:2x2x1
jax: 0.10.0
libtpu: 0.0.40
codegen_flags: <defaults>
</compile_context>

<pallas_src>
import jax
import jax.numpy as jnp
from jax.experimental import pallas as pl
from jax.experimental.pallas import tpu as pltpu

LANES = 128
MAX_BLOCK_ROWS = 2048     # (2048, 128) f32 = 1 MiB per input block per step
CHUNK_ROWS = 64           # inner-loop tile; keeps live intermediates in vregs
NUM_SLICES = 2            # leading "parallel" grid axis (uses both TCs on v7x)


def _partial_sums(x2, t2):
    """Kernel over a (rows, 128) view.

    Returns f32[4]: [sum(p*t), sum(p), sum(t), sum(bce_terms)] with
    p = sigmoid(x) and bce_terms = -(t*log(p) + (1-t)*log(1-p)) clamped at -100
    (matching torch.nn.functional.binary_cross_entropy).
    """
    total_rows = x2.shape[0]

    block_rows = MAX_BLOCK_ROWS if total_rows >= MAX_BLOCK_ROWS else total_rows
    chunk_rows = CHUNK_ROWS if block_rows % CHUNK_ROWS == 0 else block_rows
    num_chunks = block_rows // chunk_rows
    nb = pl.cdiv(total_rows, block_rows)      # number of real blocks
    steps = pl.cdiv(nb, NUM_SLICES)           # blocks handled per slice

    def kernel(x_ref, t_ref, out_ref, acc_ref):
        c = pl.program_id(0)
        j = pl.program_id(1)

        @pl.when(j == 0)
        def _():
            acc_ref[...] = jnp.zeros_like(acc_ref)

        # First logical row of this block. It can lie past total_rows for the
        # padded tail block or the "dead" blocks of the parallel split; the
        # per-element mask below zeroes those contributions.
        block_row0 = (c * steps + j) * block_rows

        @pl.loop(0, num_chunks)
        def _(ci):
            r0 = ci * chunk_rows
            if chunk_rows % 8 == 0:
                r0 = pl.multiple_of(r0, 8)
            x = x_ref[pl.ds(r0, chunk_rows), :].astype(jnp.float32)
            t = t_ref[pl.ds(r0, chunk_rows), :].astype(jnp.float32)

            row = jax.lax.broadcasted_iota(jnp.int32, (chunk_rows, LANES), 0)
            valid = (block_row0 + r0 + row) < total_rows

            # Stable logits-space sigmoid / BCE: one exp + one log1p per
            # element plus a reciprocal on the otherwise-idle EUP slot.
            a = jnp.abs(x)
            e = jnp.exp(-a)                        # in (0, 1], never overflows
            r = pl.reciprocal(1.0 + e)             # exact
            p = jnp.where(x >= 0.0, r, e * r)      # sigmoid(x)
            l1pe = jnp.log1p(e)                    # softplus(-|x|)
            log_p = jnp.maximum(-(jnp.maximum(-x, 0.0) + l1pe), -100.0)
            log_1mp = jnp.maximum(-(jnp.maximum(x, 0.0) + l1pe), -100.0)
            bce_el = -(t * log_p + (1.0 - t) * log_1mp)

            zero = jnp.zeros_like(x)
            p_m = jnp.where(valid, p, zero)
            t_m = jnp.where(valid, t, zero)
            bce_m = jnp.where(valid, bce_el, zero)

            # Pure elementwise accumulation; no per-step cross-lane reductions.
            acc_ref[0] += p_m * t_m
            acc_ref[1] += p_m
            acc_ref[2] += t_m
            acc_ref[3] += bce_m

        # Single sublane reduction per slice, at the very end; lane-dense write.
        @pl.when(j == steps - 1)
        def _():
            out_ref[0] = jnp.sum(acc_ref[...], axis=1)

    def block_map(c, j):
        # Clamp dead blocks of the parallel split to a valid index; their
        # contributions are masked out inside the kernel.
        return (jnp.minimum(c * steps + j, nb - 1), 0)

    out = pl.pallas_call(
        kernel,
        out_shape=jax.ShapeDtypeStruct((NUM_SLICES, 4, LANES), jnp.float32),
        grid_spec=pltpu.PrefetchScalarGridSpec(
            num_scalar_prefetch=0,
            grid=(NUM_SLICES, steps),
            in_specs=[
                pl.BlockSpec((block_rows, LANES), block_map),
                pl.BlockSpec((block_rows, LANES), block_map),
            ],
            out_specs=pl.BlockSpec((1, 4, LANES), lambda c, j: (c, 0, 0)),
            scratch_shapes=[pltpu.VMEM((4, chunk_rows, LANES), jnp.float32)],
        ),
        compiler_params=pltpu.CompilerParams(
            dimension_semantics=("parallel", "arbitrary")),
    )(x2, t2)

    return jnp.sum(out, axis=(0, 2))


def dice_bce_loss(inputs, targets, smooth=1.0):
    """Matches DiceBCELoss.forward: sigmoid -> flatten -> dice + mean BCE."""
    n = inputs.size
    x_flat = inputs.reshape(-1)      # native dtype; widening happens in-kernel
    t_flat = targets.reshape(-1)

    n_main = (n // LANES) * LANES

    if n_main:
        total_rows = n_main // LANES
        x2 = x_flat[:n_main].reshape(total_rows, LANES)   # no-copy when n % 128 == 0
        t2 = t_flat[:n_main].reshape(total_rows, LANES)
        sums = _partial_sums(x2, t2)
        inter, sum_p, sum_t, bce_sum = sums[0], sums[1], sums[2], sums[3]
    else:
        inter = sum_p = sum_t = bce_sum = jnp.float32(0.0)

    rem = n - n_main
    if rem:
        # Fewer than 128 leftover elements: trivial JAX glue (avoids padding /
        # re-materializing the whole flattened tensor just for the ragged tail).
        xr = x_flat[n_main:].astype(jnp.float32)
        tr = t_flat[n_main:].astype(jnp.float32)
        pr = jax.nn.sigmoid(xr)
        inter = inter + jnp.sum(pr * tr)
        sum_p = sum_p + jnp.sum(pr)
        sum_t = sum_t + jnp.sum(tr)
        bce_sum = bce_sum + jnp.sum(
            -(tr * jnp.maximum(jnp.log(pr), -100.0)
              + (1.0 - tr) * jnp.maximum(jnp.log1p(-pr), -100.0)))

    dice_loss = 1.0 - (2.0 * inter + smooth) / (sum_p + sum_t + smooth)
    bce = bce_sum / n
    return bce + dice_loss


def _reference(inputs, targets, smooth=1.0):
    p = jax.nn.sigmoid(inputs.astype(jnp.float32)).reshape(-1)
    t = targets.astype(jnp.float32).reshape(-1)
    intersection = jnp.sum(p * t)
    dice_loss = 1.0 - (2.0 * intersection + smooth) / (jnp.sum(p) + jnp.sum(t) + smooth)
    bce = jnp.mean(-(t * jnp.log(p) + (1.0 - t) * jnp.log1p(-p)))
    return bce + dice_loss


if __name__ == "__main__":
    key = jax.random.PRNGKey(0)
    k1, k2 = jax.random.split(key)
    # NCHW, matching typical segmentation-logit inputs to this loss.
    x = jax.random.normal(k1, (2, 4, 16, 16), dtype=jnp.float32)
    t = (jax.random.uniform(k2, (2, 4, 16, 16)) > 0.5).astype(jnp.float32)

    loss = dice_bce_loss(x, t)
    jax.block_until_ready(loss)

    ref = _reference(x, t)
    assert jnp.allclose(loss, ref, rtol=1e-5, atol=1e-5), (loss, ref)
    print("KERNEL_OK")
</pallas_src>

<mosaic_0001>
module attributes {stable_mosaic.version = 11 : i64} {
  func.func @kernel(%arg0: i32, %arg1: i32, %arg2: memref<16x128xf32, #tpu.memory_space<vmem>>, %arg3: memref<16x128xf32, #tpu.memory_space<vmem>>, %arg4: memref<1x4x128xf32, #tpu.memory_space<vmem>>, %arg5: memref<4x16x128xf32, #tpu.memory_space<vmem>>) attributes {dimension_semantics = [#tpu.dimension_semantics<parallel>, #tpu.dimension_semantics<arbitrary>], iteration_bounds = array<i64: 2, 1>, scalar_prefetch = 0 : i64, scratch_operands = 1 : i64, tpu.core_type = #tpu.core_type<tc>, window_params = [{transform_indices = @transform_0, window_bounds = array<i64: 16, 128>}, {transform_indices = @transform_1, window_bounds = array<i64: 16, 128>}, {transform_indices = @transform_2, window_bounds = array<i64: 1, 4, 128>}]} {
    %c0_i32 = arith.constant 0 : i32
    %0 = arith.cmpi eq, %arg1, %c0_i32 : i32
    %1 = arith.extui %0 : i1 to i32
    %c0_i32_0 = arith.constant 0 : i32
    %2 = arith.cmpi ne, %1, %c0_i32_0 : i32
    scf.if %2 {
      %cst_43 = arith.constant 0.000000e+00 : f32
      %87 = vector.broadcast %cst_43 : f32 to vector<4x16x128xf32>
      %c0_44 = arith.constant 0 : index
      %c0_45 = arith.constant 0 : index
      %c0_46 = arith.constant 0 : index
      %88 = vector.load %arg5[%c0_44, %c0_45, %c0_46] : memref<4x16x128xf32, #tpu.memory_space<vmem>>, vector<4x16x128xf32>
      tpu.vector_store %arg5[%c0_44, %c0_45, %c0_46], %87 {strides = array<i32>} : memref<4x16x128xf32, #tpu.memory_space<vmem>>, vector<4x16x128xf32>,
    } else {
    }
    %c1_i32 = arith.constant 1 : i32
    %3 = arith.muli %arg0, %c1_i32 : i32
    %4 = arith.addi %3, %arg1 : i32
    %c16_i32 = arith.constant 16 : i32
    %5 = arith.muli %4, %c16_i32 : i32
    %c0_i32_1 = arith.constant 0 : i32
    %c1_i32_2 = arith.constant 1 : i32
    %6 = arith.muli %c0_i32_1, %c1_i32_2 : i32
    %c0_i32_3 = arith.constant 0 : i32
    %7 = arith.addi %c0_i32_3, %6 : i32
    %c16_i32_4 = arith.constant 16 : i32
    %8 = arith.muli %7, %c16_i32_4 : i32
    %9 = tpu.assume_multiple %8, 8 : i32
    %10 = arith.index_cast %9 : i32 to index
    %c0 = arith.constant 0 : index
    %11 = vector.load %arg2[%10, %c0] : memref<16x128xf32, #tpu.memory_space<vmem>>, vector<16x128xf32>
    %12 = arith.index_cast %9 : i32 to index
    %c0_5 = arith.constant 0 : index
    %13 = vector.load %arg3[%12, %c0_5] : memref<16x128xf32, #tpu.memory_space<vmem>>, vector<16x128xf32>
    %14 = tpu.iota {dimensions = array<i32: 0>} : vector<16x128xi32>
    %15 = arith.addi %5, %9 : i32
    %16 = vector.broadcast %15 : i32 to vector<16x128xi32>
    %17 = arith.addi %16, %14 : vector<16x128xi32>
    %c16_i32_6 = arith.constant 16 : i32
    %18 = vector.broadcast %c16_i32_6 : i32 to vector<16x128xi32>
    %19 = arith.cmpi slt, %17, %18 : vector<16x128xi32>
    %20 = math.absf %11 : vector<16x128xf32>
    %cst = arith.constant 0.000000e+00 : f32
    %21 = vector.broadcast %cst : f32 to vector<16x128xf32>
    %22 = arith.subf %21, %20 : vector<16x128xf32>
    %23 = math.exp %22 : vector<16x128xf32>
    %cst_7 = arith.constant 1.000000e+00 : f32
    %24 = vector.broadcast %cst_7 : f32 to vector<16x128xf32>
    %25 = arith.addf %24, %23 : vector<16x128xf32>
    %26 = tpu.reciprocal %25 : vector<16x128xf32> -> vector<16x128xf32>
    %cst_8 = arith.constant 0.000000e+00 : f32
    %27 = vector.broadcast %cst_8 : f32 to vector<16x128xf32>
    %28 = arith.cmpf oge, %11, %27 : vector<16x128xf32>
    %29 = arith.mulf %23, %26 : vector<16x128xf32>
    %30 = arith.select %28, %26, %29 : vector<16x128xi1>, vector<16x128xf32>
    %31 = math.log1p %23 : vector<16x128xf32>
    %cst_9 = arith.constant 0.000000e+00 : f32
    %32 = vector.broadcast %cst_9 : f32 to vector<16x128xf32>
    %33 = arith.subf %32, %11 : vector<16x128xf32>
    %cst_10 = arith.constant 0.000000e+00 : f32
    %34 = vector.broadcast %cst_10 : f32 to vector<16x128xf32>
    %35 = arith.maximumf %33, %34 : vector<16x128xf32>
    %36 = arith.addf %35, %31 : vector<16x128xf32>
    %cst_11 = arith.constant 0.000000e+00 : f32
    %37 = vector.broadcast %cst_11 : f32 to vector<16x128xf32>
    %38 = arith.subf %37, %36 : vector<16x128xf32>
    %cst_12 = arith.constant -1.000000e+02 : f32
    %39 = vector.broadcast %cst_12 : f32 to vector<16x128xf32>
    %40 = arith.maximumf %38, %39 : vector<16x128xf32>
    %cst_13 = arith.constant 0.000000e+00 : f32
    %41 = vector.broadcast %cst_13 : f32 to vector<16x128xf32>
    %42 = arith.maximumf %11, %41 : vector<16x128xf32>
    %43 = arith.addf %42, %31 : vector<16x128xf32>
    %cst_14 = arith.constant 0.000000e+00 : f32
    %44 = vector.broadcast %cst_14 : f32 to vector<16x128xf32>
    %45 = arith.subf %44, %43 : vector<16x128xf32>
    %cst_15 = arith.constant -1.000000e+02 : f32
    %46 = vector.broadcast %cst_15 : f32 to vector<16x128xf32>
    %47 = arith.maximumf %45, %46 : vector<16x128xf32>
    %48 = arith.mulf %13, %40 : vector<16x128xf32>
    %cst_16 = arith.constant 1.000000e+00 : f32
    %49 = vector.broadcast %cst_16 : f32 to vector<16x128xf32>
    %50 = arith.subf %49, %13 : vector<16x128xf32>
    %51 = arith.mulf %50, %47 : vector<16x128xf32>
    %52 = arith.addf %48, %51 : vector<16x128xf32>
    %cst_17 = arith.constant 0.000000e+00 : f32
    %53 = vector.broadcast %cst_17 : f32 to vector<16x128xf32>
    %54 = arith.subf %53, %52 : vector<16x128xf32>
    %cst_18 = arith.constant 0.000000e+00 : f32
    %55 = vector.broadcast %cst_18 : f32 to vector<16x128xf32>
    %56 = arith.select %19, %30, %55 : vector<16x128xi1>, vector<16x128xf32>
    %57 = arith.select %19, %13, %55 : vector<16x128xi1>, vector<16x128xf32>
    %58 = arith.select %19, %54, %55 : vector<16x128xi1>, vector<16x128xf32>
    %c0_19 = arith.constant 0 : index
    %c0_20 = arith.constant 0 : index
    %c0_21 = arith.constant 0 : index
    %59 = vector.load %arg5[%c0_19, %c0_20, %c0_21] : memref<4x16x128xf32, #tpu.memory_space<vmem>>, vector<1x16x128xf32>
    %60 = vector.shape_cast %59 : vector<1x16x128xf32> to vector<16x128xf32>
    %61 = arith.mulf %56, %57 : vector<16x128xf32>
    %62 = arith.addf %60, %61 : vector<16x128xf32>
    %c0_22 = arith.constant 0 : index
    %c0_23 = arith.constant 0 : index
    %c0_24 = arith.constant 0 : index
    %63 = vector.load %arg5[%c0_22, %c0_23, %c0_24] : memref<4x16x128xf32, #tpu.memory_space<vmem>>, vector<1x16x128xf32>
    %64 = vector.shape_cast %63 : vector<1x16x128xf32> to vector<16x128xf32>
    %65 = vector.shape_cast %62 : vector<16x128xf32> to vector<1x16x128xf32>
    tpu.vector_store %arg5[%c0_22, %c0_23, %c0_24], %65 {strides = array<i32>} : memref<4x16x128xf32, #tpu.memory_space<vmem>>, vector<1x16x128xf32>,
    %c1 = arith.constant 1 : index
    %c0_25 = arith.constant 0 : index
    %c0_26 = arith.constant 0 : index
    %66 = vector.load %arg5[%c1, %c0_25, %c0_26] : memref<4x16x128xf32, #tpu.memory_space<vmem>>, vector<1x16x128xf32>
    %67 = vector.shape_cast %66 : vector<1x16x128xf32> to vector<16x128xf32>
    %68 = arith.addf %67, %56 : vector<16x128xf32>
    %c1_27 = arith.constant 1 : index
    %c0_28 = arith.constant 0 : index
    %c0_29 = arith.constant 0 : index
    %69 = vector.load %arg5[%c1_27, %c0_28, %c0_29] : memref<4x16x128xf32, #tpu.memory_space<vmem>>, vector<1x16x128xf32>
    %70 = vector.shape_cast %69 : vector<1x16x128xf32> to vector<16x128xf32>
    %71 = vector.shape_cast %68 : vector<16x128xf32> to vector<1x16x128xf32>
    tpu.vector_store %arg5[%c1_27, %c0_28, %c0_29], %71 {strides = array<i32>} : memref<4x16x128xf32, #tpu.memory_space<vmem>>, vector<1x16x128xf32>,
    %c2 = arith.constant 2 : index
    %c0_30 = arith.constant 0 : index
    %c0_31 = arith.constant 0 : index
    %72 = vector.load %arg5[%c2, %c0_30, %c0_31] : memref<4x16x128xf32, #tpu.memory_space<vmem>>, vector<1x16x128xf32>
    %73 = vector.shape_cast %72 : vector<1x16x128xf32> to vector<16x128xf32>
    %74 = arith.addf %73, %57 : vector<16x128xf32>
    %c2_32 = arith.constant 2 : index
    %c0_33 = arith.constant 0 : index
    %c0_34 = arith.constant 0 : index
    %75 = vector.load %arg5[%c2_32, %c0_33, %c0_34] : memref<4x16x128xf32, #tpu.memory_space<vmem>>, vector<1x16x128xf32>
    %76 = vector.shape_cast %75 : vector<1x16x128xf32> to vector<16x128xf32>
    %77 = vector.shape_cast %74 : vector<16x128xf32> to vector<1x16x128xf32>
    tpu.vector_store %arg5[%c2_32, %c0_33, %c0_34], %77 {strides = array<i32>} : memref<4x16x128xf32, #tpu.memory_space<vmem>>, vector<1x16x128xf32>,
    %c3 = arith.constant 3 : index
    %c0_35 = arith.constant 0 : index
    %c0_36 = arith.constant 0 : index
    %78 = vector.load %arg5[%c3, %c0_35, %c0_36] : memref<4x16x128xf32, #tpu.memory_space<vmem>>, vector<1x16x128xf32>
    %79 = vector.shape_cast %78 : vector<1x16x128xf32> to vector<16x128xf32>
    %80 = arith.addf %79, %58 : vector<16x128xf32>
    %c3_37 = arith.constant 3 : index
    %c0_38 = arith.constant 0 : index
    %c0_39 = arith.constant 0 : index
    %81 = vector.load %arg5[%c3_37, %c0_38, %c0_39] : memref<4x16x128xf32, #tpu.memory_space<vmem>>, vector<1x16x128xf32>
    %82 = vector.shape_cast %81 : vector<1x16x128xf32> to vector<16x128xf32>
    %83 = vector.shape_cast %80 : vector<16x128xf32> to vector<1x16x128xf32>
    tpu.vector_store %arg5[%c3_37, %c0_38, %c0_39], %83 {strides = array<i32>} : memref<4x16x128xf32, #tpu.memory_space<vmem>>, vector<1x16x128xf32>,
    %c1_i32_40 = arith.constant 1 : i32
    %c0_i32_41 = arith.constant 0 : i32
    %84 = arith.cmpi eq, %arg1, %c0_i32_41 : i32
    %85 = arith.extui %84 : i1 to i32
    %c0_i32_42 = arith.constant 0 : i32
    %86 = arith.cmpi ne, %85, %c0_i32_42 : i32
    scf.if %86 {
      %c0_43 = arith.constant 0 : index
      %c0_44 = arith.constant 0 : index
      %c0_45 = arith.constant 0 : index
      %87 = vector.load %arg5[%c0_43, %c0_44, %c0_45] : memref<4x16x128xf32, #tpu.memory_space<vmem>>, vector<4x16x128xf32>
      %cst_46 = arith.constant dense<0.000000e+00> : vector<4x128xf32>
      %88 = vector.multi_reduction <add>, %87, %cst_46 [1] : vector<4x16x128xf32> to vector<4x128xf32>
      %c0_47 = arith.constant 0 : index
      %c0_48 = arith.constant 0 : index
      %c0_49 = arith.constant 0 : index
      %89 = vector.load %arg4[%c0_47, %c0_48, %c0_49] : memref<1x4x128xf32, #tpu.memory_space<vmem>>, vector<1x4x128xf32>
      %90 = vector.shape_cast %89 : vector<1x4x128xf32> to vector<4x128xf32>
      %91 = vector.shape_cast %88 : vector<4x128xf32> to vector<1x4x128xf32>
      tpu.vector_store %arg4[%c0_47, %c0_48, %c0_49], %91 {strides = array<i32>} : memref<1x4x128xf32, #tpu.memory_space<vmem>>, vector<1x4x128xf32>,
    } else {
    }
    return
  }
  func.func @transform_0(%arg0: i32, %arg1: i32) -> (i32, i32) {
    %c1_i32 = arith.constant 1 : i32
    %0 = arith.muli %arg0, %c1_i32 : i32
    %1 = arith.addi %0, %arg1 : i32
    %c0_i32 = arith.constant 0 : i32
    %2 = arith.minsi %1, %c0_i32 : i32
    %c0_i32_0 = arith.constant 0 : i32
    %c0_i32_1 = arith.constant 0 : i32
    return %2, %c0_i32_0 : i32, i32
  }
  func.func @transform_1(%arg0: i32, %arg1: i32) -> (i32, i32) {
    %c1_i32 = arith.constant 1 : i32
    %0 = arith.muli %arg0, %c1_i32 : i32
    %1 = arith.addi %0, %arg1 : i32
    %c0_i32 = arith.constant 0 : i32
    %2 = arith.minsi %1, %c0_i32 : i32
    %c0_i32_0 = arith.constant 0 : i32
    %c0_i32_1 = arith.constant 0 : i32
    return %2, %c0_i32_0 : i32, i32
  }
  func.func @transform_2(%arg0: i32, %arg1: i32) -> (i32, i32, i32) {
    %c0_i32 = arith.constant 0 : i32
    %c0_i32_0 = arith.constant 0 : i32
    %c0_i32_1 = arith.constant 0 : i32
    return %arg0, %c0_i32, %c0_i32_0 : i32, i32, i32
  }
}

</mosaic_0001>

<llo_original>
// kernel: tpu_custom_call.1
$region0: #{tpu_custom_call.1}
  #allocation0 [shape = 'u32[]', space=smem, size = 0x4, offset = 0x4, fixed_abs, tag = 'smem constant byte address 0x4 - core index']
  #allocation1 [shape = 'u32[144,128]{1,0:T(1,128)}', space=vmem, size = 0x12000, scoped, tag = 'internal scratch']
  #allocation2 [shape = 'f32[4,16,128]{2,1,0:T(8,128)}', space=vmem, size = 0x8000, scoped, tag = 'scratch operand']
  %s0 = inlined_call_operand.hbm [shape: f32[16,128], index: 0, kind: input, shape index: {}]
  %s1 = inlined_call_operand.hbm [shape: f32[16,128], index: 1, kind: input, shape index: {}]
  %s2 = inlined_call_operand.hbm [shape: f32[2,4,128], index: 2, kind: output, shape index: {}]
  %s3 = sld [smem:[#allocation0]]
  $region57: #{tpu_custom_call.1} parent=0
    _
  %s5 = ssub.s32 1, %s3
  %s6 = scalar_select 0, %s5, %s3
  $region1: #{tpu_custom_call.1} parent=0
    #allocation3 [shape = 'u8[16384]{0}', space=vmem, size = 0x4000, scoped, tag = 'input window, operand 0']
    #allocation4 [shape = 's32[2]{0}', space=sflag, size = 0x8, scoped, tag = 'scoped memory for tpu_custom_call.1']
    #allocation5 [shape = 's32[2]{0}', space=sflag, size = 0x8, scoped, tag = 'scoped memory for tpu_custom_call.1']
    #allocation6 [shape = 'u8[16384]{0}', space=vmem, size = 0x4000, scoped, tag = 'input window, operand 1']
    #allocation7 [shape = 's32[2]{0}', space=sflag, size = 0x8, scoped, tag = 'scoped memory for tpu_custom_call.1']
    #allocation8 [shape = 'u8[4096]{0}', space=vmem, size = 0x1000, scoped, tag = 'output window, operand 0']
    %7 = vsyncpa [#allocation4], 0
    %s8 = scalar_lea.sflag [#allocation4], 1
    %9 = vsyncpa %s8, 0
    %10 = vsyncpa [#allocation7], 0
    %s11 = scalar_lea.sflag [#allocation7], 1
    %12 = vsyncpa %s11, 0
    %13 = vsyncpa [#allocation5], 0
    %s14 = scalar_lea.sflag [#allocation5], 1
    %15 = vsyncpa %s14, 0
    loop: start=0, step=1, limit=4
    $region2: #{tpu_custom_call.1} parent=1 // loop_pre_header
      _
    $region3: #{tpu_custom_call.1} parent=1 // loop_header
      %s17 = sphi 0, %s21
      %p18 = scmp.ge.s32.totalorder %s17, 4
      %s24 = sphi 0, %s36
      %s25 = sphi 0, %s32
      %s26 = sphi 0, %s24
      %s27 = sphi 0, %s25
      %s28 = sphi 0, %s26
      %s29 = sphi 0, %s27
      %s45 = sphi 0, %s47
      %s48 = sphi 0, %s45
      %s49 = sphi 0, %s48
      %s65 = sphi 0, %s49
      %s77 = sphi 0, %s79
      %s80 = sphi 0, %s77
      %s81 = sphi 0, %s80
      %s97 = sphi 0, %s81
      %s103 = sphi 0, %s105
      %s106 = sphi 0, %s103
      %s107 = sphi 0, %s106
      %s123 = sphi 0, %s107
    $region4: #{tpu_custom_call.1} parent=1 // loop_header_branch
      %20 = sbr.rel (%p18) target = $region8
    $region5: #{tpu_custom_call.1} parent=1 // loop_body
      %s22 = ssub.s32 %s17, 1
      %s23 = ssub.s32 %s17, 2
      %s30 = sadd.s32 1, %s25
      %p31 = scmp.ge.s32.totalorder %s30, 1
      %s32 = scalar_select %p31, 0, %s30
      %s33 = sadd.s32 1, %s24
      %s34 = scalar_select %p31, %s33, %s24
      %p35 = scmp.ge.s32.totalorder %s34, 2
      %s36 = scalar_select %p35, 0, %s34
      %s37 = sadd.s32 %s24, %s25
      %p38 = scmp.lt.s32.totalorder %s37, 0
      %s39 = scalar_select %p38, %s37, 0
      %s40 = sadd.s32 %s36, %s32
      %p41 = scmp.lt.s32.totalorder %s40, 0
      %s42 = scalar_select %p41, %s40, 0
      %s43 = ssub.s32 %s39, %s42
      %p44 = scmp.eq.s32.totalorder %s43, 0
      %s46 = sadd.s32 %s45, 1
      %s47 = scalar_select %p44, %s45, %s46
      %p50 = pneg %p44
      %p51 = scmp.eq.s32.totalorder %s17, 1
      %p52 = por %p50, %p51
      %p53 = scmp.ne.s32.totalorder %s45, %s48
      %p54 = scmp.eq.s32.totalorder %s17, 0
      %p55 = por %p53, %p54
      %p56 = scmp.ne.s32.totalorder %s45, %s48
      %p57 = scmp.eq.s32.totalorder %s22, 1
      %p58 = por %p56, %p57
      %p59 = scmp.ne.s32.totalorder %s48, %s49
      %p60 = scmp.eq.s32.totalorder %s22, 0
      %p61 = por %p59, %p60
      %p62 = scmp.ne.s32.totalorder %s48, %s49
      %p63 = scmp.eq.s32.totalorder %s23, 1
      %p64 = por %p62, %p63
      %p66 = scmp.ne.s32.totalorder %s49, %s65
      %p67 = scmp.eq.s32.totalorder %s23, 0
      %p68 = por %p66, %p67
      %s69 = sadd.s32 %s24, %s25
      %p70 = scmp.lt.s32.totalorder %s69, 0
      %s71 = scalar_select %p70, %s69, 0
      %s72 = sadd.s32 %s36, %s32
      %p73 = scmp.lt.s32.totalorder %s72, 0
      %s74 = scalar_select %p73, %s72, 0
      %s75 = ssub.s32 %s71, %s74
      %p76 = scmp.eq.s32.totalorder %s75, 0
      %s78 = sadd.s32 %s77, 1
      %s79 = scalar_select %p76, %s77, %s78
      %p82 = pneg %p76
      %p83 = scmp.eq.s32.totalorder %s17, 1
      %p84 = por %p82, %p83
      %p85 = scmp.ne.s32.totalorder %s77, %s80
      %p86 = scmp.eq.s32.totalorder %s17, 0
      %p87 = por %p85, %p86
      %p88 = scmp.ne.s32.totalorder %s77, %s80
      %p89 = scmp.eq.s32.totalorder %s22, 1
      %p90 = por %p88, %p89
      %p91 = scmp.ne.s32.totalorder %s80, %s81
      %p92 = scmp.eq.s32.totalorder %s22, 0
      %p93 = por %p91, %p92
      %p94 = scmp.ne.s32.totalorder %s80, %s81
      %p95 = scmp.eq.s32.totalorder %s23, 1
      %p96 = por %p94, %p95
      %p98 = scmp.ne.s32.totalorder %s81, %s97
      %p99 = scmp.eq.s32.totalorder %s23, 0
      %p100 = por %p98, %p99
      %s101 = ssub.s32 %s24, %s36
      %p102 = scmp.eq.s32.totalorder %s101, 0
      %s104 = sadd.s32 %s103, 1
      %s105 = scalar_select %p102, %s103, %s104
      %p108 = pneg %p102
      %p109 = scmp.eq.s32.totalorder %s17, 1
      %p110 = por %p108, %p109
      %p111 = scmp.ne.s32.totalorder %s103, %s106
      %p112 = scmp.eq.s32.totalorder %s17, 0
      %p113 = por %p111, %p112
      %p114 = scmp.ne.s32.totalorder %s103, %s106
      %p115 = scmp.eq.s32.totalorder %s22, 1
      %p116 = por %p114, %p115
      %p117 = scmp.ne.s32.totalorder %s106, %s107
      %p118 = scmp.eq.s32.totalorder %s22, 0
      %p119 = por %p117, %p118
      %p120 = scmp.ne.s32.totalorder %s106, %s107
      %p121 = scmp.eq.s32.totalorder %s23, 1
      %p122 = por %p120, %p121
      %p124 = scmp.ne.s32.totalorder %s107, %s123
      %p125 = scmp.eq.s32.totalorder %s23, 0
      %p126 = por %p124, %p125
      %p127 = scmp.le.s32.totalorder 1, %s17
      %p128 = scmp.lt.s32.totalorder %s17, 3
      %p129 = pnand %p127, %p128
      %p130 = pneg %p129
      // Predicated region
      $region9: #{tpu_custom_call.1} parent=5 // pred_check
        _
      $region10: #{tpu_custom_call.1} parent=5 // pred_check_branch
        %132 = sbr.rel (%p129) target = $region12
      $region11: #{tpu_custom_call.1} parent=5 // pred_region
        %s133 = ssub.s32 %s17, 1
      $region12: #{tpu_custom_call.1} parent=5 // pred_fallthru
        _
      %p134 = scmp.lt.s32.totalorder %s17, 2
      // Predicated region
      $region13: #{tpu_custom_call.1} parent=5 // pred_check
        %p135 = pneg %p134
      $region14: #{tpu_custom_call.1} parent=5 // pred_check_branch
        %137 = sbr.rel (%p135) target = $region16
      $region15: #{tpu_custom_call.1} parent=5 // pred_region
        // Predicated region
        $region17: #{tpu_custom_call.1} parent=15 // pred_check
          %p138 = pneg %p55
        $region18: #{tpu_custom_call.1} parent=15 // pred_check_branch
          %140 = sbr.rel (%p138) target = $region20
        $region19: #{tpu_custom_call.1} parent=15 // pred_region
          %s141 = sand.u32 %s45, 1
          %s142 = scalar_lea.sflag [#allocation4], %s141
          %s143 = sand.u32 %s45, 1
          %s144 = smul.addr %s143, 16
          %s145 = scalar_lea.vmem [#allocation3], %s144
          %s146 = sadd.s32 %s24, %s25
          %p147 = scmp.lt.s32.totalorder %s146, 0
          %s148 = scalar_select %p147, %s146, 0
          %s149 = smul.u32 2, %s148
          %s151 = ssub.s32 256, 256
          %152 = vsyncadd %s142, %s151
          %s153 = smul.addr %s149, 128
          %s154 = scalar_lea.hbm %s0, %s153
          %s155 = sshll.u32 %s145, 4
          %s156 = int_to_ptr.vmem [resolvable:$true] %s155
          %161 = dma.hbm_to_vmem [thread:$0]  %s154, 256, %s156, %s142, 128, 128, 8
        $region20: #{tpu_custom_call.1} parent=15 // pred_fallthru
          _
        // Predicated region
        $region21: #{tpu_custom_call.1} parent=15 // pred_check
          %p162 = pneg %p87
        $region22: #{tpu_custom_call.1} parent=15 // pred_check_branch
          %164 = sbr.rel (%p162) target = $region24
        $region23: #{tpu_custom_call.1} parent=15 // pred_region
          %s165 = sand.u32 %s77, 1
          %s166 = scalar_lea.sflag [#allocation7], %s165
          %s167 = sand.u32 %s77, 1
          %s168 = smul.addr %s167, 16
          %s169 = scalar_lea.vmem [#allocation6], %s168
          %s170 = sadd.s32 %s24, %s25
          %p171 = scmp.lt.s32.totalorder %s170, 0
          %s172 = scalar_select %p171, %s170, 0
          %s173 = smul.u32 2, %s172
          %s175 = ssub.s32 256, 256
          %176 = vsyncadd %s166, %s175
          %s177 = smul.addr %s173, 128
          %s178 = scalar_lea.hbm %s1, %s177
          %s179 = sshll.u32 %s169, 4
          %s180 = int_to_ptr.vmem [resolvable:$true] %s179
          %185 = dma.hbm_to_vmem [thread:$0]  %s178, 256, %s180, %s166, 128, 128, 8
        $region24: #{tpu_custom_call.1} parent=15 // pred_fallthru
          _
      $region16: #{tpu_custom_call.1} parent=5 // pred_fallthru
        _
      %p186 = scmp.le.s32.totalorder 1, %s17
      %p187 = scmp.lt.s32.totalorder %s17, 3
      %p188 = pnand %p186, %p187
      %p189 = pneg %p188
      // Predicated region
      $region25: #{tpu_custom_call.1} parent=5 // pred_check
        _
      $region26: #{tpu_custom_call.1} parent=5 // pred_check_branch
        %191 = sbr.rel (%p188) target = $region28
      $region27: #{tpu_custom_call.1} parent=5 // pred_region
        %s192 = ssub.s32 %s17, 1
        %s193 = sand.u32 %s48, 1
        %s194 = scalar_lea.sflag [#allocation4], %s193
        %s195 = sand.u32 %s48, 1
        %s196 = smul.addr %s195, 16
        %s197 = scalar_lea.vmem [#allocation3], %s196
        // Predicated region
        $region29: #{tpu_custom_call.1} parent=27 // pred_check
          %p198 = pneg %p61
        $region30: #{tpu_custom_call.1} parent=27 // pred_check_branch
          %200 = sbr.rel (%p198) target = $region32
        $region31: #{tpu_custom_call.1} parent=27 // pred_region
          %201 = dma.done %s194, 256
        $region32: #{tpu_custom_call.1} parent=27 // pred_fallthru
          _
        %s202 = sand.u32 %s80, 1
        %s203 = scalar_lea.sflag [#allocation7], %s202
        %s204 = sand.u32 %s80, 1
        %s205 = smul.addr %s204, 16
        %s206 = scalar_lea.vmem [#allocation6], %s205
        // Predicated region
        $region33: #{tpu_custom_call.1} parent=27 // pred_check
          %p207 = pneg %p93
        $region34: #{tpu_custom_call.1} parent=27 // pred_check_branch
          %209 = sbr.rel (%p207) target = $region36
        $region35: #{tpu_custom_call.1} parent=27 // pred_region
          %210 = dma.done %s203, 256
        $region36: #{tpu_custom_call.1} parent=27 // pred_fallthru
          _
        %s211 = sand.u32 %s48, 1
        %s212 = scalar_lea.sflag [#allocation4], %s211
        %s213 = sand.u32 %s48, 1
        %s214 = smul.addr %s213, 16
        %s215 = scalar_lea.vmem [#allocation3], %s214
        %p216 = pneg %p61
        %p217 = pneg %p58
        %s218 = sand.u32 %s80, 1
        %s219 = scalar_lea.sflag [#allocation7], %s218
        %s220 = sand.u32 %s80, 1
        %s221 = smul.addr %s220, 16
        %s222 = scalar_lea.vmem [#allocation6], %s221
        %p223 = pneg %p93
        %p224 = pneg %p90
        %p225 = pneg %p119
        %p226 = pneg %p116
        %s227 = sand.u32 %s106, 1
        %s228 = scalar_lea.sflag [#allocation5], %s227
        %s229 = sand.u32 %s106, 1
        %s230 = smul.addr %s229, 4
        %s231 = scalar_lea.vmem [#allocation8], %s230
        %s232 = sadd.s32 %s26, %s27
        %p233 = scmp.lt.s32.totalorder %s232, 0
        %s234 = scalar_select %p233, %s232, 0
        %s235 = smul.u32 2, %s234
        %s236 = sadd.s32 %s26, %s27
        %p237 = scmp.lt.s32.totalorder %s236, 0
        %s238 = scalar_select %p237, %s236, 0
        %s239 = smul.u32 2, %s238
        %p240 = scmp.eq.s32.totalorder %s27, 0
        // Predicated region
        $region37: #{tpu_custom_call.1} parent=27 // pred_check
          %p241 = pneg %p240
        $region38: #{tpu_custom_call.1} parent=27 // pred_check_branch
          %243 = sbr.rel (%p241) target = $region40
        $region39: #{tpu_custom_call.1} parent=27 // pred_region
          %244 = vst [vmem:[#allocation2] sm:$0xff] 0.0
          %245 = vst [vmem:[#allocation2 + $0x8] sm:$0xff] 0.0
          %246 = vst [vmem:[#allocation2 + $0x10] sm:$0xff] 0.0
          %247 = vst [vmem:[#allocation2 + $0x18] sm:$0xff] 0.0
          %248 = vst [vmem:[#allocation2 + $0x20] sm:$0xff] 0.0
          %249 = vst [vmem:[#allocation2 + $0x28] sm:$0xff] 0.0
          %250 = vst [vmem:[#allocation2 + $0x30] sm:$0xff] 0.0
          %251 = vst [vmem:[#allocation2 + $0x38] sm:$0xff] 0.0
        $region40: #{tpu_custom_call.1} parent=27 // pred_fallthru
          _
        %s252 = sadd.s32 %s26, %s27
        %s253 = smul.u32 %s252, 16
        %v254 = vld [vmem:[%s197] sm:$0xff]
        %v255 = vld [vmem:[%s197 + $0x8] sm:$0xff]
        %v256 = vld [vmem:[%s206] sm:$0xff]
        %v257 = vld [vmem:[%s206 + $0x8] sm:$0xff]
        %v258 = vlaneseq
        %v259 = vshrl.u32 %v258, 7
        %v260 = vadd.s32 %v259, 8
        %s261 = sadd.s32 %s253, 0
        %v262 = vstv %s261
        %v263 = vadd.s32 %v262, %v259
        %v264 = vadd.s32 %v262, %v260
        %vm265 = vcmp.lt.s32.totalorder %v263, 16
        %vm266 = vcmp.lt.s32.totalorder %v264, 16
        %v267 = vand.u32 2147483647, %v254
        %v268 = vand.u32 2147483647, %v255
        %v269 = vsub.f32 0.0, %v267
        %v270 = vsub.f32 0.0, %v268
        %v271 = vmul.f32 %v269, 1.442695
        %v272 = vpow.pop %v271
        %v273 = vmul.f32 %v270, 1.442695
        %v274 = vpow.pop %v273
        %v275 = vadd.f32 %v272, 1.0
        %v276 = vadd.f32 %v274, 1.0
        %v277 = vrcp.pop %v275
        %v278 = vrcp.pop %v276
        %vm279 = vcmp.ge.f32.partialorder %v254, 0.0
        %vm280 = vcmp.ge.f32.partialorder %v255, 0.0
        %v281 = vmul.f32 %v272, %v277
        %v282 = vmul.f32 %v274, %v278
        %v283 = vsel %vm279, %v277, %v281
        %v284 = vsel %vm280, %v278, %v282
        %v285 = vadd.f32 %v272, 1.0
        %v286 = vlog2.pop %v285
        %v287 = vmul.f32 %v286, 0.6931472
        %v288 = vmul.f32 -0.5, %v272
        %v289 = vadd.f32 %v288, 1.0
        %v290 = vmul.f32 %v289, %v272
        %v291 = vand.u32 2147483647, %v272
        %vm292 = vcmp.lt.f32.partialorder %v291, 0.0004427343
        %v293 = vsel %vm292, %v290, %v287
        %v294 = vadd.f32 %v274, 1.0
        %v295 = vlog2.pop %v294
        %v296 = vmul.f32 %v295, 0.6931472
        %v297 = vmul.f32 -0.5, %v274
        %v298 = vadd.f32 %v297, 1.0
        %v299 = vmul.f32 %v298, %v274
        %v300 = vand.u32 2147483647, %v274
        %vm301 = vcmp.lt.f32.partialorder %v300, 0.0004427343
        %v302 = vsel %vm301, %v299, %v296
        %v303 = vsub.f32 0.0, %v254
        %v304 = vsub.f32 0.0, %v255
        %v305 = vmax.f32 %v303, 0.0
        %v306 = vmax.f32 %v304, 0.0
        %v307 = vadd.f32 %v305, %v293
        %v308 = vadd.f32 %v306, %v302
        %v309 = vsub.f32 0.0, %v307
        %v310 = vsub.f32 0.0, %v308
        %v311 = vmax.f32 %v309, -100.0
        %v312 = vmax.f32 %v310, -100.0
        %v313 = vmax.f32 %v254, 0.0
        %v314 = vmax.f32 %v255, 0.0
        %v315 = vadd.f32 %v313, %v293
        %v316 = vadd.f32 %v314, %v302
        %v317 = vsub.f32 0.0, %v315
        %v318 = vsub.f32 0.0, %v316
        %v319 = vmax.f32 %v317, -100.0
        %v320 = vmax.f32 %v318, -100.0
        %v321 = vmul.f32 %v256, %v311
        %v322 = vmul.f32 %v257, %v312
        %v323 = vsub.f32 1.0, %v256
        %v324 = vsub.f32 1.0, %v257
        %v325 = vmul.f32 %v323, %v319
        %v326 = vmul.f32 %v324, %v320
        %v327 = vadd.f32 %v321, %v325
        %v328 = vadd.f32 %v322, %v326
        %v329 = vsub.f32 0.0, %v327
        %v330 = vsub.f32 0.0, %v328
        %v331 = vsel %vm265, %v283, 0.0
        %v332 = vsel %vm266, %v284, 0.0
        %v333 = vsel %vm265, %v256, 0.0
        %v334 = vsel %vm266, %v257, 0.0
        %v335 = vsel %vm265, %v329, 0.0
        %v336 = vsel %vm266, %v330, 0.0
        %v337 = vld [vmem:[#allocation2] sm:$0xff]
        %v338 = vld [vmem:[#allocation2 + $0x8] sm:$0xff]
        %v339 = vmul.f32 %v331, %v333
        %v340 = vmul.f32 %v332, %v334
        %v341 = vadd.f32 %v337, %v339
        %v342 = vadd.f32 %v338, %v340
        %343 = vst [vmem:[#allocation2] sm:$0xff] %v341
        %344 = vst [vmem:[#allocation2 + $0x8] sm:$0xff] %v342
        %s345 = scalar_lea.vmem [#allocation2], 16
        %v346 = vld [vmem:[%s345] sm:$0xff]
        %v347 = vld [vmem:[%s345 + $0x8] sm:$0xff]
        %v348 = vadd.f32 %v346, %v331
        %v349 = vadd.f32 %v347, %v332
        %350 = vst [vmem:[%s345] sm:$0xff] %v348
        %351 = vst [vmem:[%s345 + $0x8] sm:$0xff] %v349
        %s352 = scalar_lea.vmem [#allocation2], 32
        %v353 = vld [vmem:[%s352] sm:$0xff]
        %v354 = vld [vmem:[%s352 + $0x8] sm:$0xff]
        %v355 = vadd.f32 %v353, %v333
        %v356 = vadd.f32 %v354, %v334
        %357 = vst [vmem:[%s352] sm:$0xff] %v355
        %358 = vst [vmem:[%s352 + $0x8] sm:$0xff] %v356
        %s359 = scalar_lea.vmem [#allocation2], 48
        %v360 = vld [vmem:[%s359] sm:$0xff]
        %v361 = vld [vmem:[%s359 + $0x8] sm:$0xff]
        %v362 = vadd.f32 %v360, %v335
        %v363 = vadd.f32 %v361, %v336
        %364 = vst [vmem:[%s359] sm:$0xff] %v362
        %365 = vst [vmem:[%s359 + $0x8] sm:$0xff] %v363
        // Predicated region
        $region41: #{tpu_custom_call.1} parent=27 // pred_check
          %p366 = pneg %p240
        $region42: #{tpu_custom_call.1} parent=27 // pred_check_branch
          %368 = sbr.rel (%p366) target = $region44
        $region43: #{tpu_custom_call.1} parent=27 // pred_region
          %v369 = vld [vmem:[#allocation2] sm:$0xff]
          %v370 = vld [vmem:[#allocation2 + $0x8] sm:$0xff]
          %v371 = vld [vmem:[#allocation2 + $0x10] sm:$0xff]
          %v372 = vld [vmem:[#allocation2 + $0x18] sm:$0xff]
          %v373 = vld [vmem:[#allocation2 + $0x20] sm:$0xff]
          %v374 = vld [vmem:[#allocation2 + $0x28] sm:$0xff]
          %v375 = vld [vmem:[#allocation2 + $0x30] sm:$0xff]
          %v376 = vld [vmem:[#allocation2 + $0x38] sm:$0xff]
          %v377 = vadd.f32 %v369, %v370
          %v378 = vrot.slane %v377, 4
          %v379 = vadd.f32 %v377, %v378
          %v380 = vrot.slane %v379, 2
          %v381 = vadd.f32 %v379, %v380
          %v382 = vrot.slane %v381, 1
          %v383 = vadd.f32 %v381, %v382
          %v384 = vadd.f32 %v371, %v372
          %v385 = vrot.slane %v384, 4
          %v386 = vadd.f32 %v384, %v385
          %v387 = vrot.slane %v386, 2
          %v388 = vadd.f32 %v386, %v387
          %v389 = vrot.slane %v388, 1
          %v390 = vadd.f32 %v388, %v389
          %v391 = vadd.f32 %v373, %v374
          %v392 = vrot.slane %v391, 4
          %v393 = vadd.f32 %v391, %v392
          %v394 = vrot.slane %v393, 2
          %v395 = vadd.f32 %v393, %v394
          %v396 = vrot.slane %v395, 1
          %v397 = vadd.f32 %v395, %v396
          %v398 = vadd.f32 %v375, %v376
          %v399 = vrot.slane %v398, 4
          %v400 = vadd.f32 %v398, %v399
          %v401 = vrot.slane %v400, 2
          %v402 = vadd.f32 %v400, %v401
          %v403 = vrot.slane %v402, 1
          %v404 = vadd.f32 %v402, %v403
          %vm409 = vcmask 1041409
          %v410 = vsel %vm409, %v390, %v383
          %vm411 = vcmask 1042434
          %v412 = vsel %vm411, %v397, %v410
          %vm413 = vcmask 1043459
          %v414 = vsel %vm413, %v404, %v412
          %416 = vst [vmem:[%s231] sm:$0xf] %v414
        $region44: #{tpu_custom_call.1} parent=27 // pred_fallthru
          _
        %s417 = sand.u32 %s106, 1
        %s418 = scalar_lea.sflag [#allocation5], %s417
        %s419 = sand.u32 %s106, 1
        %s420 = smul.addr %s419, 4
        %s421 = scalar_lea.vmem [#allocation8], %s420
        // Predicated region
        $region45: #{tpu_custom_call.1} parent=27 // pred_check
          %p422 = pneg %p116
        $region46: #{tpu_custom_call.1} parent=27 // pred_check_branch
          %424 = sbr.rel (%p422) target = $region48
        $region47: #{tpu_custom_call.1} parent=27 // pred_region
          %s426 = ssub.s32 64, 64
          %427 = vsyncadd %s418, %s426
          %s428 = smul.addr %s26, 64
          %s429 = scalar_lea.hbm %s2, %s428
          %s431 = sshll.u32 %s421, 4
          %s432 = int_to_ptr.vmem [resolvable:$true] %s431
          %434 = dma.vmem_to_hbm [thread:$0]  %s432, 64, %s429, %s418
        $region48: #{tpu_custom_call.1} parent=27 // pred_fallthru
          _
      $region28: #{tpu_custom_call.1} parent=5 // pred_fallthru
        _
      %p435 = scmp.le.s32.totalorder 2, %s17
      // Predicated region
      $region49: #{tpu_custom_call.1} parent=5 // pred_check
        %p436 = pneg %p435
      $region50: #{tpu_custom_call.1} parent=5 // pred_check_branch
        %438 = sbr.rel (%p436) target = $region52
      $region51: #{tpu_custom_call.1} parent=5 // pred_region
        %s439 = ssub.s32 %s17, 2
        // Predicated region
        $region53: #{tpu_custom_call.1} parent=51 // pred_check
          %p440 = pneg %p122
        $region54: #{tpu_custom_call.1} parent=51 // pred_check_branch
          %442 = sbr.rel (%p440) target = $region56
        $region55: #{tpu_custom_call.1} parent=51 // pred_region
          %s443 = sand.u32 %s107, 1
          %s444 = scalar_lea.sflag [#allocation5], %s443
          %s445 = sand.u32 %s107, 1
          %s446 = smul.addr %s445, 4
          %s447 = scalar_lea.vmem [#allocation8], %s446
          %448 = dma.done %s444, 64
        $region56: #{tpu_custom_call.1} parent=51 // pred_fallthru
          _
      $region52: #{tpu_custom_call.1} parent=5 // pred_fallthru
        _
    $region6: #{tpu_custom_call.1} parent=1 // loop_footer
      %s21 = sadd.s32 1, %s17
    $region7: #{tpu_custom_call.1} parent=1 // loop_footer_branch
      %16 = sbr.rel target = $region3
    $region8: #{tpu_custom_call.1} parent=1 // loop_exit
      _
    %449 = vsyncpa [#allocation4], 1
    %s450 = scalar_lea.sflag [#allocation4], 1
    %451 = vsyncpa %s450, 1
    %452 = vsyncpa [#allocation7], 1
    %s453 = scalar_lea.sflag [#allocation7], 1
    %454 = vsyncpa %s453, 1
    %455 = vsyncpa [#allocation5], 1
    %s456 = scalar_lea.sflag [#allocation5], 1
    %457 = vsyncpa %s456, 1

</llo_original>
